<compile_context>
chip_gen: v7x
topology: tpu7x:2x2x1
jax: 0.10.0
libtpu: 0.0.40
codegen_flags: <defaults>
</compile_context>

<pallas_src>
import jax
import jax.numpy as jnp
from jax.experimental import pallas as pl
from jax.experimental.pallas import tpu as pltpu


def _cos_distance2_kernel(x_ref, y_ref, out_ref):
    # x_ref: (C, TILE) logits, class dim on sublanes, batch on lanes.
    # y_ref: (1, TILE) int32 labels.  out_ref: (1, TILE) f32 per-sample values.
    x = x_ref[...].astype(jnp.float32)                               # (C, TILE)

    # --- first L2 normalize over the class (sublane) axis -----------------
    sumsq = jnp.sum(x * x, axis=0, keepdims=True)                    # (1, TILE)
    inv_norm = 1.0 / (jnp.sqrt(sumsq) + 1e-07)
    z = x * inv_norm

    # --- stable softmax fused with the second L2 normalize ----------------
    #   p = e / s,  ||p|| = sqrt(sum e^2) / s
    #   q[y] = p[y] / (||p|| + eps) = e[y] / (sqrt(sum e^2) + eps * s)
    m = jnp.max(z, axis=0, keepdims=True)
    e = jnp.exp(z - m)
    s = jnp.sum(e, axis=0, keepdims=True)
    sum_e2 = jnp.sum(e * e, axis=0, keepdims=True)

    # --- pick e[y[i], i] via a one-hot mask over the small sublane axis ----
    # TODO(synk): labels outside [0, C) silently produce 0 (PyTorch scatter_ would error).
    y = y_ref[...]                                                   # (1, TILE)
    cls_ids = jax.lax.broadcasted_iota(jnp.int32, e.shape, 0)        # (C, TILE)
    e_y = jnp.sum(jnp.where(cls_ids == y, e, 0.0), axis=0, keepdims=True)

    out_ref[...] = (e_y / (jnp.sqrt(sum_e2) + 1e-07 * s)).astype(out_ref.dtype)


def _pick_lane_tile(n):
    """Lane tile: multiple of 128, <= 8192, aiming for >= 2 grid steps."""
    if n >= 16384:
        return 8192
    if n >= 256:
        return max(128, ((n // 2) // 128) * 128)
    return 128


def cos_distance_loss2(x, y, t=1.0):
    """Pallas equivalent of cosDistanceLoss2(t).forward(x, y). Returns shape (N,)."""
    del t  # unused in the PyTorch forward()
    n, c = x.shape

    # Batch-on-lanes layout (one-time wrapper transpose = layout plumbing).
    xt = jnp.transpose(x)                          # (C, N)
    y2 = y.astype(jnp.int32).reshape(1, n)         # (1, N)

    tile = _pick_lane_tile(n)
    n_pad = pl.cdiv(n, tile) * tile
    if n_pad != n:
        # Pad rows are all-zero logits / label 0; their outputs are discarded.
        xt = jnp.pad(xt, ((0, 0), (0, n_pad - n)))
        y2 = jnp.pad(y2, ((0, 0), (0, n_pad - n)))

    grid = (n_pad // tile,)
    out = pl.pallas_call(
        _cos_distance2_kernel,
        out_shape=jax.ShapeDtypeStruct((1, n_pad), jnp.float32),
        grid=grid,
        in_specs=[
            pl.BlockSpec((c, tile), lambda i: (0, i)),
            pl.BlockSpec((1, tile), lambda i: (0, i)),
        ],
        out_specs=pl.BlockSpec((1, tile), lambda i: (0, i)),
        compiler_params=pltpu.CompilerParams(
            dimension_semantics=("parallel",),
        ),
    )(xt, y2)
    return out[0, :n]


def _reference(x, y):
    # Pure-JAX reference mirroring the PyTorch forward exactly.
    xf = x.astype(jnp.float32)
    n1 = jnp.sqrt(jnp.sum(xf * xf, axis=1, keepdims=True)) + 1e-07
    z = xf / n1
    p = jax.nn.softmax(z, axis=1)
    n2 = jnp.sqrt(jnp.sum(p * p, axis=1, keepdims=True)) + 1e-07
    q = p / n2
    return jnp.take_along_axis(q, y.reshape(-1, 1), axis=1)[:, 0]


if __name__ == "__main__":
    key = jax.random.PRNGKey(0)
    C = 10  # hard-coded by the module's one_hot of width 10

    # Small primary check (single padded tile).
    kx, ky, key = jax.random.split(key, 3)
    N = 16
    x = jax.random.normal(kx, (N, C), dtype=jnp.float32)
    y = jax.random.randint(ky, (N,), 0, C, dtype=jnp.int32)
    out = jax.block_until_ready(cos_distance_loss2(x, y, t=1.0))
    ref = _reference(x, y)
    assert out.shape == (N,), out.shape
    assert jnp.allclose(out, ref, atol=1e-5, rtol=1e-5), (out, ref)

    # Second check: N not a tile multiple -> exercises padding + multi-step grid.
    kx2, ky2 = jax.random.split(key)
    N2 = 300
    x2 = jax.random.normal(kx2, (N2, C), dtype=jnp.float32)
    y2 = jax.random.randint(ky2, (N2,), 0, C, dtype=jnp.int32)
    out2 = jax.block_until_ready(cos_distance_loss2(x2, y2, t=1.0))
    ref2 = _reference(x2, y2)
    assert out2.shape == (N2,), out2.shape
    assert jnp.allclose(out2, ref2, atol=1e-5, rtol=1e-5), (out2, ref2)

    print("KERNEL_OK")
</pallas_src>

<mosaic_0001>
module attributes {stable_mosaic.version = 11 : i64} {
  func.func @_cos_distance2_kernel(%arg0: i32, %arg1: memref<10x128xf32, #tpu.memory_space<vmem>>, %arg2: memref<1x128xi32, #tpu.memory_space<vmem>>, %arg3: memref<1x128xf32, #tpu.memory_space<vmem>>) attributes {dimension_semantics = [#tpu.dimension_semantics<parallel>], iteration_bounds = array<i64: 1>, scalar_prefetch = 0 : i64, scratch_operands = 0 : i64, tpu.core_type = #tpu.core_type<tc>, window_params = [{transform_indices = @transform_0, window_bounds = array<i64: 10, 128>}, {transform_indices = @transform_1, window_bounds = array<i64: 1, 128>}, {transform_indices = @transform_2, window_bounds = array<i64: 1, 128>}]} {
    %c0 = arith.constant 0 : index
    %c0_0 = arith.constant 0 : index
    %0 = vector.load %arg1[%c0, %c0_0] : memref<10x128xf32, #tpu.memory_space<vmem>>, vector<10x128xf32>
    %1 = arith.mulf %0, %0 : vector<10x128xf32>
    %cst = arith.constant dense<0.000000e+00> : vector<128xf32>
    %2 = vector.multi_reduction <add>, %1, %cst [0] : vector<10x128xf32> to vector<128xf32>
    %3 = vector.shape_cast %2 : vector<128xf32> to vector<1x128xf32>
    %4 = math.sqrt %3 : vector<1x128xf32>
    %cst_1 = arith.constant 1.000000e-07 : f32
    %5 = vector.broadcast %cst_1 : f32 to vector<1x128xf32>
    %6 = arith.addf %4, %5 : vector<1x128xf32>
    %cst_2 = arith.constant 1.000000e+00 : f32
    %7 = vector.broadcast %cst_2 : f32 to vector<1x128xf32>
    %8 = arith.divf %7, %6 : vector<1x128xf32>
    %9 = vector.broadcast %8 : vector<1x128xf32> to vector<10x128xf32>
    %10 = arith.mulf %0, %9 : vector<10x128xf32>
    %cst_3 = arith.constant dense<0xFF800000> : vector<128xf32>
    %11 = vector.multi_reduction <maximumf>, %10, %cst_3 [0] : vector<10x128xf32> to vector<128xf32>
    %12 = vector.shape_cast %11 : vector<128xf32> to vector<1x128xf32>
    %13 = vector.broadcast %12 : vector<1x128xf32> to vector<10x128xf32>
    %14 = arith.subf %10, %13 : vector<10x128xf32>
    %15 = math.exp %14 : vector<10x128xf32>
    %cst_4 = arith.constant dense<0.000000e+00> : vector<128xf32>
    %16 = vector.multi_reduction <add>, %15, %cst_4 [0] : vector<10x128xf32> to vector<128xf32>
    %17 = vector.shape_cast %16 : vector<128xf32> to vector<1x128xf32>
    %18 = arith.mulf %15, %15 : vector<10x128xf32>
    %cst_5 = arith.constant dense<0.000000e+00> : vector<128xf32>
    %19 = vector.multi_reduction <add>, %18, %cst_5 [0] : vector<10x128xf32> to vector<128xf32>
    %20 = vector.shape_cast %19 : vector<128xf32> to vector<1x128xf32>
    %c0_6 = arith.constant 0 : index
    %c0_7 = arith.constant 0 : index
    %21 = vector.load %arg2[%c0_6, %c0_7] : memref<1x128xi32, #tpu.memory_space<vmem>>, vector<1x128xi32>
    %22 = tpu.iota {dimensions = array<i32: 0>} : vector<10x128xi32>
    %23 = vector.broadcast %21 : vector<1x128xi32> to vector<10x128xi32>
    %24 = arith.cmpi eq, %22, %23 : vector<10x128xi32>
    %cst_8 = arith.constant 0.000000e+00 : f32
    %25 = vector.broadcast %cst_8 : f32 to vector<10x128xf32>
    %26 = arith.select %24, %15, %25 : vector<10x128xi1>, vector<10x128xf32>
    %cst_9 = arith.constant dense<0.000000e+00> : vector<128xf32>
    %27 = vector.multi_reduction <add>, %26, %cst_9 [0] : vector<10x128xf32> to vector<128xf32>
    %28 = vector.shape_cast %27 : vector<128xf32> to vector<1x128xf32>
    %29 = math.sqrt %20 : vector<1x128xf32>
    %cst_10 = arith.constant 1.000000e-07 : f32
    %30 = vector.broadcast %cst_10 : f32 to vector<1x128xf32>
    %31 = arith.mulf %30, %17 : vector<1x128xf32>
    %32 = arith.addf %29, %31 : vector<1x128xf32>
    %33 = arith.divf %28, %32 : vector<1x128xf32>
    %c0_11 = arith.constant 0 : index
    %c0_12 = arith.constant 0 : index
    %34 = vector.load %arg3[%c0_11, %c0_12] : memref<1x128xf32, #tpu.memory_space<vmem>>, vector<1x128xf32>
    tpu.vector_store %arg3[%c0_11, %c0_12], %33 {strides = array<i32>} : memref<1x128xf32, #tpu.memory_space<vmem>>, vector<1x128xf32>,
    return
  }
  func.func @transform_0(%arg0: i32) -> (i32, i32) {
    %c0_i32 = arith.constant 0 : i32
    %c0_i32_0 = arith.constant 0 : i32
    return %c0_i32, %arg0 : i32, i32
  }
  func.func @transform_1(%arg0: i32) -> (i32, i32) {
    %c0_i32 = arith.constant 0 : i32
    %c0_i32_0 = arith.constant 0 : i32
    return %c0_i32, %arg0 : i32, i32
  }
  func.func @transform_2(%arg0: i32) -> (i32, i32) {
    %c0_i32 = arith.constant 0 : i32
    %c0_i32_0 = arith.constant 0 : i32
    return %c0_i32, %arg0 : i32, i32
  }
}

</mosaic_0001>

<llo_original>
// kernel: tpu_custom_call.1
$region0: #{tpu_custom_call.1}
  #allocation0 [shape = 'u32[]', space=smem, size = 0x4, offset = 0x4, fixed_abs, tag = 'smem constant byte address 0x4 - core index']
  #allocation1 [shape = 'u32[144,128]{1,0:T(1,128)}', space=vmem, size = 0x12000, scoped, tag = 'internal scratch']
  %s0 = inlined_call_operand.hbm [shape: f32[10,128], index: 0, kind: input, shape index: {}]
  %s1 = inlined_call_operand.vmem [shape: s32[1,128], index: 1, kind: input, shape index: {}]
  %s2 = inlined_call_operand.hbm [shape: f32[1,128], index: 2, kind: output, shape index: {}]
  %s3 = sld [smem:[#allocation0]]
  $region22: #{tpu_custom_call.1} parent=0
    _
  %s5 = ssub.s32 1, %s3
  %s6 = scalar_select 0, %s5, %s3
  $region1: #{tpu_custom_call.1} parent=0
    #allocation2 [shape = 'u8[8192]{0}', space=vmem, size = 0x2000, scoped, tag = 'input window, operand 0, single buffered']
    #allocation3 [shape = 's32[1]{0}', space=sflag, size = 0x4, scoped, tag = 'scoped memory for tpu_custom_call.1']
    #allocation4 [shape = 's32[1]{0}', space=sflag, size = 0x4, scoped, tag = 'scoped memory for tpu_custom_call.1']
    #allocation5 [shape = 'u8[512]{0}', space=vmem, size = 0x400, scoped, tag = 'output window, operand 0, single buffered']
    %7 = vsyncpa [#allocation3], 0
    %8 = vsyncpa [#allocation4], 0
    // Predicated region
    $region2: #{tpu_custom_call.1} parent=1 // pred_check
      _
    $region3: #{tpu_custom_call.1} parent=1 // pred_check_branch
      %10 = sbr.rel (0) target = $region5
    $region4: #{tpu_custom_call.1} parent=1 // pred_region
      %s12 = ssub.s32 256, 256
      %13 = vsyncadd [#allocation3], %s12
      %s14 = sshll.u32 [#allocation2], 4
      %s15 = int_to_ptr.vmem [resolvable:$true] %s14
      %20 = dma.hbm_to_vmem [thread:$0]  %s0, 256, %s15, [#allocation3], 128, 128, 8
    $region5: #{tpu_custom_call.1} parent=1 // pred_fallthru
      _
    // Predicated region
    $region6: #{tpu_custom_call.1} parent=1 // pred_check
      _
    $region7: #{tpu_custom_call.1} parent=1 // pred_check_branch
      %22 = sbr.rel (0) target = $region9
    $region8: #{tpu_custom_call.1} parent=1 // pred_region
      _
    $region9: #{tpu_custom_call.1} parent=1 // pred_fallthru
      _
    // Predicated region
    $region10: #{tpu_custom_call.1} parent=1 // pred_check
      _
    $region11: #{tpu_custom_call.1} parent=1 // pred_check_branch
      %24 = sbr.rel (0) target = $region13
    $region12: #{tpu_custom_call.1} parent=1 // pred_region
      %25 = dma.done [#allocation3], 256
    $region13: #{tpu_custom_call.1} parent=1 // pred_fallthru
      _
    %v26 = vld [vmem:[#allocation2] sm:$0xff]
    %v27 = vld [vmem:[#allocation2 + $0x8] sm:$0x3]
    %v28 = vmul.f32 %v26, %v26
    %v29 = vmul.f32 %v27, %v27
    %vm30 = vcmask 1041408
    %v31 = vsel %vm30, %v29, 0.0
    %v32 = vadd.f32 %v28, %v31
    %v33 = vrot.slane %v32, 4
    %v34 = vadd.f32 %v32, %v33
    %v35 = vrot.slane %v34, 2
    %v36 = vadd.f32 %v34, %v35
    %v37 = vrot.slane %v36, 1
    %v38 = vadd.f32 %v36, %v37
    %v39 = vrsqrt.pop %v38
    %v40 = vmul.f32 %v38, %v39
    %vm41 = vcmp.eq.f32.partialorder %v38, inf
    %v42 = vsel %vm41, %v38, %v40
    %vm43 = vcmp.eq.f32.partialorder %v38, 0.0
    %v44 = vand.u32 %v38, 2147483648
    %v45 = vsel %vm43, %v44, %v42
    %v46 = vadd.f32 %v45, 1e-07
    %v47 = vrcp.pop %v46
    %v48 = vmul.f32 1.0, %v47
    %v49 = vmul.f32 %v26, %v48
    %v50 = vmul.f32 %v27, %v48
    %v51 = vsel %vm30, %v50, -inf
    %v52 = vmax.f32 %v49, %v51
    %v53 = vrot.slane %v52, 4
    %v54 = vmax.f32 %v52, %v53
    %v55 = vrot.slane %v54, 2
    %v56 = vmax.f32 %v54, %v55
    %v57 = vrot.slane %v56, 1
    %v58 = vmax.f32 %v56, %v57
    %v59 = vsub.f32 %v49, %v58
    %v60 = vsub.f32 %v50, %v58
    %v61 = vmul.f32 %v59, 1.442695
    %v62 = vpow.pop %v61
    %v63 = vmul.f32 %v60, 1.442695
    %v64 = vpow.pop %v63
    %v65 = vsel %vm30, %v64, 0.0
    %v66 = vadd.f32 %v62, %v65
    %v67 = vrot.slane %v66, 4
    %v68 = vadd.f32 %v66, %v67
    %v69 = vrot.slane %v68, 2
    %v70 = vadd.f32 %v68, %v69
    %v71 = vrot.slane %v70, 1
    %v72 = vadd.f32 %v70, %v71
    %v73 = vmul.f32 %v62, %v62
    %v74 = vmul.f32 %v64, %v64
    %v75 = vsel %vm30, %v74, 0.0
    %v76 = vadd.f32 %v73, %v75
    %v77 = vrot.slane %v76, 4
    %v78 = vadd.f32 %v76, %v77
    %v79 = vrot.slane %v78, 2
    %v80 = vadd.f32 %v78, %v79
    %v81 = vrot.slane %v80, 1
    %v82 = vadd.f32 %v80, %v81
    %v83 = vld [vmem:[%s1] sm:$0x1]
    %v84 = vlaneseq
    %v85 = vshrl.u32 %v84, 7
    %v86 = vadd.s32 %v85, 8
    %v87 = vlaneseq
    %v88 = vshrl.u32 %v87, 7
    %v89 = vsub.s32 0, %v88
    %v90 = vrot.slane %v83, %v89
    %vm91 = vcmp.eq.s32.totalorder %v85, %v90
    %vm92 = vcmp.eq.s32.totalorder %v86, %v90
    %v93 = vsel %vm91, %v62, 0.0
    %v94 = vsel %vm92, %v64, 0.0
    %v95 = vsel %vm30, %v94, 0.0
    %v96 = vadd.f32 %v93, %v95
    %v97 = vrot.slane %v96, 4
    %v98 = vadd.f32 %v96, %v97
    %v99 = vrot.slane %v98, 2
    %v100 = vadd.f32 %v98, %v99
    %v101 = vrot.slane %v100, 1
    %v102 = vadd.f32 %v100, %v101
    %v103 = vrsqrt.pop %v82
    %v104 = vmul.f32 %v82, %v103
    %vm105 = vcmp.eq.f32.partialorder %v82, inf
    %v106 = vsel %vm105, %v82, %v104
    %vm107 = vcmp.eq.f32.partialorder %v82, 0.0
    %v108 = vand.u32 %v82, 2147483648
    %v109 = vsel %vm107, %v108, %v106
    %v110 = vmul.f32 %v72, 1e-07
    %v111 = vadd.f32 %v109, %v110
    %v112 = vrcp.pop %v111
    %v113 = vmul.f32 %v102, %v112
    %114 = vst [vmem:[#allocation5] sm:$0x1] %v113
    // Predicated region
    $region14: #{tpu_custom_call.1} parent=1 // pred_check
      _
    $region15: #{tpu_custom_call.1} parent=1 // pred_check_branch
      %116 = sbr.rel (0) target = $region17
    $region16: #{tpu_custom_call.1} parent=1 // pred_region
      %s118 = ssub.s32 16, 16
      %119 = vsyncadd [#allocation4], %s118
      %s121 = sshll.u32 [#allocation5], 4
      %s122 = int_to_ptr.vmem [resolvable:$true] %s121
      %124 = dma.vmem_to_hbm [thread:$0]  %s122, 16, %s2, [#allocation4]
    $region17: #{tpu_custom_call.1} parent=1 // pred_fallthru
      _
    // Predicated region
    $region18: #{tpu_custom_call.1} parent=1 // pred_check
      _
    $region19: #{tpu_custom_call.1} parent=1 // pred_check_branch
      %126 = sbr.rel (0) target = $region21
    $region20: #{tpu_custom_call.1} parent=1 // pred_region
      %127 = dma.done [#allocation4], 16
    $region21: #{tpu_custom_call.1} parent=1 // pred_fallthru
      _
    %128 = vsyncpa [#allocation3], 1
    %129 = vsyncpa [#allocation4], 1

</llo_original>
